<compile_context>
chip_gen: v7x
topology: tpu7x:2x2x1
jax: 0.10.0
libtpu: 0.0.40
codegen_flags: <defaults>
</compile_context>

<pallas_src>
import functools

import jax
import jax.numpy as jnp
from jax.experimental import pallas as pl
from jax.experimental.pallas import tpu as pltpu

HIDDEN = 16      # matches Policy.hidden
HEAD_PAD = 128   # lane-dense fused-head width (multiple of 128)
MAX_TB = 256     # cap batch tile so the f32 intermediate h stays in-register


def _policy_kernel(x_ref, w_ref, b_ref, out_ref, *, s_pad):
    # x_ref : (tb, s_pad)  bf16   padded input rows/cols (padding is zeros)
    # w_ref : (s_pad+128, 128) bf16
    #         rows [:s_pad] = fc1 W^T (cols >= hidden are 0)
    #         rows [s_pad:] = fused actor+critic head W^T (rows >= hidden are 0)
    # b_ref : (2, 128) f32   row 0 = fc1 bias (padded), row 1 = head bias (padded)
    # out_ref: (tb, 128) bf16
    x = x_ref[...]                 # bf16
    w1 = w_ref[:s_pad, :]          # bf16 (s_pad, 128)
    wh = w_ref[s_pad:, :]          # bf16 (128, 128)
    b1 = b_ref[0:1, :]             # f32  (1, 128)
    bh = b_ref[1:2, :]             # f32  (1, 128)

    # fc1 + ReLU (f32 accumulate / f32 elementwise; padded hidden cols stay 0)
    h = jnp.dot(x, w1, preferred_element_type=jnp.float32) + b1
    h = jnp.maximum(h, 0.0)

    # fused actor+critic head: one MXU matmul, one lane-dense bf16 store
    out = jnp.dot(h.astype(jnp.bfloat16), wh, preferred_element_type=jnp.float32) + bh
    out_ref[...] = out.astype(out_ref.dtype)


def pack_params(params, s_pad):
    """One-time packing of all Policy weights into two lane-dense arrays (bf16 W, f32 b)."""
    hidden = params["fc1_w"].shape[0]
    state_space = params["fc1_w"].shape[1]
    action_space = params["actor_w"].shape[0]
    assert hidden <= HEAD_PAD and action_space + 1 <= HEAD_PAD

    # fc1: (hidden, S) -> (S, hidden) -> zero-pad to (s_pad, 128)
    w1t = params["fc1_w"].T
    w1_pad = jnp.zeros((s_pad, HEAD_PAD), jnp.float32)
    w1_pad = w1_pad.at[:state_space, :hidden].set(w1t)

    # fused head: concat actor (A, hidden) and state (1, hidden) -> (hidden, A+1) -> pad (128, 128)
    wh = jnp.concatenate([params["actor_w"], params["state_w"]], axis=0).T
    wh_pad = jnp.zeros((HEAD_PAD, HEAD_PAD), jnp.float32)
    wh_pad = wh_pad.at[:hidden, : action_space + 1].set(wh)

    w_pack = jnp.concatenate([w1_pad, wh_pad], axis=0).astype(jnp.bfloat16)  # (s_pad+128, 128)

    b1_pad = jnp.zeros((HEAD_PAD,), jnp.float32).at[:hidden].set(params["fc1_b"])
    bh = jnp.concatenate([params["actor_b"], params["state_b"]])
    bh_pad = jnp.zeros((HEAD_PAD,), jnp.float32).at[: action_space + 1].set(bh)
    b_pack = jnp.stack([b1_pad, bh_pad], axis=0)  # (2, 128) f32

    return w_pack, b_pack


def _round_up(x, m):
    return -(-x // m) * m


@functools.partial(jax.jit, static_argnames=("action_space",))
def policy_forward(x, w_pack, b_pack, sigma, *, action_space):
    """Returns (action_mean, sigma, state_value); Normal(action_mean, sigma) is the
    distribution the torch module builds."""
    batch, state_space = x.shape
    s_pad = w_pack.shape[0] - HEAD_PAD

    # --- batch tile selection (static, shapes are trace-time constants) ---
    bp8 = _round_up(batch, 8)
    if bp8 <= 8:
        tb = 8                                     # single tiny tile at toy size
    else:
        # >=2 grid steps (v7x: use both TensorCores), tile capped at MAX_TB
        tb = min(MAX_TB, _round_up(-(-bp8 // 2), 8))
    bp = _round_up(bp8, tb)                        # pad batch to a multiple of tb

    # Pad rows/cols (no-op at toy shapes) and cast operands to bf16.
    pad_rows = bp - batch
    pad_cols = s_pad - state_space
    if pad_rows or pad_cols:
        x = jnp.pad(x, ((0, pad_rows), (0, pad_cols)))
    x = x.astype(jnp.bfloat16)

    flops = 2 * bp * s_pad * HEAD_PAD + 2 * bp * HEAD_PAD * HEAD_PAD
    bytes_accessed = (
        x.size * 2 + w_pack.size * 2 + b_pack.size * 4 + bp * HEAD_PAD * 2
    )
    cost = pl.CostEstimate(
        flops=int(flops), transcendentals=0, bytes_accessed=int(bytes_accessed)
    )

    kernel = functools.partial(_policy_kernel, s_pad=s_pad)

    out = pl.pallas_call(
        kernel,
        out_shape=jax.ShapeDtypeStruct((bp, HEAD_PAD), jnp.bfloat16),
        grid=(bp // tb,),
        in_specs=[
            pl.BlockSpec((tb, s_pad), lambda i: (i, 0)),
            # constant index maps: weights/biases DMA'd once, reused across steps
            pl.BlockSpec(w_pack.shape, lambda i: (0, 0)),
            pl.BlockSpec(b_pack.shape, lambda i: (0, 0)),
        ],
        out_specs=pl.BlockSpec((tb, HEAD_PAD), lambda i: (i, 0)),
        compiler_params=pltpu.CompilerParams(dimension_semantics=("parallel",)),
        cost_estimate=cost,
    )(x, w_pack, b_pack)

    out = out[:batch].astype(jnp.float32)
    action_mean = out[:, :action_space]
    state_value = out[:, action_space : action_space + 1]
    # TODO(synk): torch.distributions.Normal has no Pallas equivalent; we return
    # its parameters (action_mean, sigma) instead.
    return action_mean, sigma, state_value


def init_params(key, state_space, action_space, hidden=HIDDEN):
    # Matches Policy.init_weights: normal(0,1) weights, zero biases, sigma = 20.0
    k1, k2, k3 = jax.random.split(key, 3)
    return {
        "fc1_w": jax.random.normal(k1, (hidden, state_space), jnp.float32),
        "fc1_b": jnp.zeros((hidden,), jnp.float32),
        "actor_w": jax.random.normal(k2, (action_space, hidden), jnp.float32),
        "actor_b": jnp.zeros((action_space,), jnp.float32),
        "state_w": jax.random.normal(k3, (1, hidden), jnp.float32),
        "state_b": jnp.zeros((1,), jnp.float32),
        "sigma": jnp.array([20.0], jnp.float32),
    }


if __name__ == "__main__":
    state_space = 8
    action_space = 4
    batch = 8

    key = jax.random.PRNGKey(0)
    kx, kp = jax.random.split(key)
    x = jax.random.normal(kx, (batch, state_space), jnp.float32)
    params = init_params(kp, state_space, action_space)

    # One-time packing (bf16 weights, f32 biases; no per-call transposes).
    s_pad = max(8, -(-state_space // 8) * 8)
    w_pack, b_pack = pack_params(params, s_pad)
    w_pack, b_pack = jax.block_until_ready((w_pack, b_pack))

    action_mean, sigma, state_value = policy_forward(
        x, w_pack, b_pack, params["sigma"], action_space=action_space
    )
    jax.block_until_ready((action_mean, sigma, state_value))

    # Reference check in plain f32 JAX (same math as the PyTorch forward).
    # Tolerance is loose because the kernel uses bf16 operands + bf16 output.
    h = jnp.maximum(x @ params["fc1_w"].T + params["fc1_b"], 0.0)
    ref_mean = h @ params["actor_w"].T + params["actor_b"]
    ref_value = h @ params["state_w"].T + params["state_b"]
    assert jnp.allclose(action_mean, ref_mean, atol=2e-1, rtol=2e-2), (
        jnp.max(jnp.abs(action_mean - ref_mean))
    )
    assert jnp.allclose(state_value, ref_value, atol=2e-1, rtol=2e-2), (
        jnp.max(jnp.abs(state_value - ref_value))
    )
    assert action_mean.shape == (batch, action_space)
    assert state_value.shape == (batch, 1)
    assert sigma.shape == (1,)

    print("KERNEL_OK")
</pallas_src>

<mosaic_0001>
module attributes {stable_mosaic.version = 11 : i64} {
  func.func @_policy_kernel(%arg0: i32, %arg1: memref<8x8xbf16, #tpu.memory_space<vmem>>, %arg2: memref<136x128xbf16, #tpu.memory_space<vmem>>, %arg3: memref<2x128xf32, #tpu.memory_space<vmem>>, %arg4: memref<8x128xbf16, #tpu.memory_space<vmem>>) attributes {dimension_semantics = [#tpu.dimension_semantics<parallel>], iteration_bounds = array<i64: 1>, scalar_prefetch = 0 : i64, scratch_operands = 0 : i64, tpu.core_type = #tpu.core_type<tc>, window_params = [{transform_indices = @transform_0, window_bounds = array<i64: 8, 8>}, {pipeline_mode = #tpu.pipeline_mode<synchronous>, transform_indices = @transform_1, window_bounds = array<i64: 136, 128>}, {pipeline_mode = #tpu.pipeline_mode<synchronous>, transform_indices = @transform_2, window_bounds = array<i64: 2, 128>}, {transform_indices = @transform_3, window_bounds = array<i64: 8, 128>}]} {
    %c0 = arith.constant 0 : index
    %c0_0 = arith.constant 0 : index
    %0 = vector.load %arg1[%c0, %c0_0] : memref<8x8xbf16, #tpu.memory_space<vmem>>, vector<8x8xbf16>
    %c0_1 = arith.constant 0 : index
    %c0_2 = arith.constant 0 : index
    %1 = vector.load %arg2[%c0_1, %c0_2] : memref<136x128xbf16, #tpu.memory_space<vmem>>, vector<8x128xbf16>
    %c8 = arith.constant 8 : index
    %c0_3 = arith.constant 0 : index
    %2 = vector.load %arg2[%c8, %c0_3] : memref<136x128xbf16, #tpu.memory_space<vmem>>, vector<128x128xbf16>
    %c0_4 = arith.constant 0 : index
    %c0_5 = arith.constant 0 : index
    %3 = vector.load %arg3[%c0_4, %c0_5] : memref<2x128xf32, #tpu.memory_space<vmem>>, vector<1x128xf32>
    %c1 = arith.constant 1 : index
    %c0_6 = arith.constant 0 : index
    %4 = vector.load %arg3[%c1, %c0_6] : memref<2x128xf32, #tpu.memory_space<vmem>>, vector<1x128xf32>
    %cst = arith.constant dense<0.000000e+00> : vector<8x128xf32>
    %5 = tpu.matmul %0, %1, %cst {dimension_numbers = #tpu.dot_dimension_numbers<[1], [0], [0], [1], [0, 0, 1, 1], [], []>} : vector<8x8xbf16>, vector<8x128xbf16>, vector<8x128xf32> -> vector<8x128xf32>
    %6 = vector.broadcast %3 : vector<1x128xf32> to vector<8x128xf32>
    %7 = arith.addf %5, %6 : vector<8x128xf32>
    %cst_7 = arith.constant 0.000000e+00 : f32
    %8 = vector.broadcast %cst_7 : f32 to vector<8x128xf32>
    %9 = arith.maximumf %7, %8 : vector<8x128xf32>
    %10 = arith.truncf %9 : vector<8x128xf32> to vector<8x128xbf16>
    %cst_8 = arith.constant dense<0.000000e+00> : vector<8x128xf32>
    %11 = tpu.matmul %10, %2, %cst_8 {dimension_numbers = #tpu.dot_dimension_numbers<[1], [0], [0], [1], [0, 0, 1, 1], [], []>} : vector<8x128xbf16>, vector<128x128xbf16>, vector<8x128xf32> -> vector<8x128xf32>
    %12 = vector.broadcast %4 : vector<1x128xf32> to vector<8x128xf32>
    %13 = arith.addf %11, %12 : vector<8x128xf32>
    %14 = arith.truncf %13 : vector<8x128xf32> to vector<8x128xbf16>
    %c0_9 = arith.constant 0 : index
    %c0_10 = arith.constant 0 : index
    %15 = vector.load %arg4[%c0_9, %c0_10] : memref<8x128xbf16, #tpu.memory_space<vmem>>, vector<8x128xbf16>
    tpu.vector_store %arg4[%c0_9, %c0_10], %14 {strides = array<i32>} : memref<8x128xbf16, #tpu.memory_space<vmem>>, vector<8x128xbf16>,
    return
  }
  func.func @transform_0(%arg0: i32) -> (i32, i32) {
    %c0_i32 = arith.constant 0 : i32
    %c0_i32_0 = arith.constant 0 : i32
    return %arg0, %c0_i32 : i32, i32
  }
  func.func @transform_1(%arg0: i32) -> (i32, i32) {
    %c0_i32 = arith.constant 0 : i32
    %c0_i32_0 = arith.constant 0 : i32
    %c0_i32_1 = arith.constant 0 : i32
    return %c0_i32, %c0_i32_0 : i32, i32
  }
  func.func @transform_2(%arg0: i32) -> (i32, i32) {
    %c0_i32 = arith.constant 0 : i32
    %c0_i32_0 = arith.constant 0 : i32
    %c0_i32_1 = arith.constant 0 : i32
    return %c0_i32, %c0_i32_0 : i32, i32
  }
  func.func @transform_3(%arg0: i32) -> (i32, i32) {
    %c0_i32 = arith.constant 0 : i32
    %c0_i32_0 = arith.constant 0 : i32
    return %arg0, %c0_i32 : i32, i32
  }
}

</mosaic_0001>

<llo_original>
// kernel: policy_forward.1
$region0: #{policy_forward.1}
  #allocation0 [shape = 'u32[]', space=smem, size = 0x4, offset = 0x4, fixed_abs, tag = 'smem constant byte address 0x4 - core index']
  #allocation1 [shape = 'u32[144,128]{1,0:T(1,128)}', space=vmem, size = 0x12000, scoped, tag = 'internal scratch']
  %s0 = inlined_call_operand.vmem [shape: bf16[8,8], index: 0, kind: input, shape index: {}]
  %s1 = inlined_call_operand.hbm [shape: bf16[136,128], index: 1, kind: input, shape index: {}]
  %s2 = inlined_call_operand.vmem [shape: f32[2,128], index: 2, kind: input, shape index: {}]
  %s3 = inlined_call_operand.vmem [shape: bf16[8,128], index: 3, kind: output, shape index: {}]
  %s4 = sld [smem:[#allocation0]]
  $region26: #{policy_forward.1} parent=0
    _
  %s6 = ssub.s32 1, %s4
  %s7 = scalar_select 0, %s6, %s4
  $region1: #{policy_forward.1} parent=0
    #allocation2 [shape = 'u8[34816]{0}', space=vmem, size = 0x8800, scoped, tag = 'input window, operand 1, single buffered']
    #allocation3 [shape = 's32[1]{0}', space=sflag, size = 0x4, scoped, tag = 'scoped memory for policy_forward.1']
    %8 = vsyncpa [#allocation3], 0
    // Predicated region
    $region2: #{policy_forward.1} parent=1 // pred_check
      _
    $region3: #{policy_forward.1} parent=1 // pred_check_branch
      %10 = sbr.rel (0) target = $region5
    $region4: #{policy_forward.1} parent=1 // pred_region
      _
    $region5: #{policy_forward.1} parent=1 // pred_fallthru
      _
    // Predicated region
    $region6: #{policy_forward.1} parent=1 // pred_check
      _
    $region7: #{policy_forward.1} parent=1 // pred_check_branch
      %12 = sbr.rel (0) target = $region9
    $region8: #{policy_forward.1} parent=1 // pred_region
      %s14 = ssub.s32 1088, 1088
      %15 = vsyncadd [#allocation3], %s14
      %s16 = sshll.u32 [#allocation2], 4
      %s17 = int_to_ptr.vmem [resolvable:$true] %s16
      %22 = dma.hbm_to_vmem [thread:$0]  %s1, 1088, %s17, [#allocation3], 64, 64, 4
    $region9: #{policy_forward.1} parent=1 // pred_fallthru
      _
    // Predicated region
    $region10: #{policy_forward.1} parent=1 // pred_check
      _
    $region11: #{policy_forward.1} parent=1 // pred_check_branch
      %24 = sbr.rel (0) target = $region13
    $region12: #{policy_forward.1} parent=1 // pred_region
      _
    $region13: #{policy_forward.1} parent=1 // pred_fallthru
      _
    // Predicated region
    $region14: #{policy_forward.1} parent=1 // pred_check
      _
    $region15: #{policy_forward.1} parent=1 // pred_check_branch
      %26 = sbr.rel (0) target = $region17
    $region16: #{policy_forward.1} parent=1 // pred_region
      %27 = dma.done [#allocation3], 1088
    $region17: #{policy_forward.1} parent=1 // pred_fallthru
      _
    %v29 = vld [vmem:[%s0] sm:$0xf]
    %v30 = vld [vmem:[#allocation2] sm:$0xf]
    %v31 = vld [vmem:[#allocation2 + $0x4] sm:$0xf]
    %v32 = vld [vmem:[#allocation2 + $0x8] sm:$0xf]
    %v33 = vld [vmem:[#allocation2 + $0xc] sm:$0xf]
    %v34 = vld [vmem:[#allocation2 + $0x10] sm:$0xf]
    %v35 = vld [vmem:[#allocation2 + $0x14] sm:$0xf]
    %v36 = vld [vmem:[#allocation2 + $0x18] sm:$0xf]
    %v37 = vld [vmem:[#allocation2 + $0x1c] sm:$0xf]
    %v38 = vld [vmem:[#allocation2 + $0x20] sm:$0xf]
    %v39 = vld [vmem:[#allocation2 + $0x24] sm:$0xf]
    %v40 = vld [vmem:[#allocation2 + $0x28] sm:$0xf]
    %v41 = vld [vmem:[#allocation2 + $0x2c] sm:$0xf]
    %v42 = vld [vmem:[#allocation2 + $0x30] sm:$0xf]
    %v43 = vld [vmem:[#allocation2 + $0x34] sm:$0xf]
    %v44 = vld [vmem:[#allocation2 + $0x38] sm:$0xf]
    %v45 = vld [vmem:[#allocation2 + $0x3c] sm:$0xf]
    %v46 = vld [vmem:[#allocation2 + $0x40] sm:$0xf]
    %v47 = vld [vmem:[%s2] sm:$0x1]
    %v48 = vld [vmem:[%s2 + $0x1] sm:$0x1]
    %v49 = vlaneseq
    %v50 = vshrl.u32 %v49, 7
    %v51 = vsub.s32 0, %v50
    %v52 = vrot.slane %v47, %v51
    %vm53 = vcmask 64512
    %v55 = vsel %vm53, %v29, 0
    %vm57 = vcmask 1043456
    %v59 = vsel %vm57, %v30, 0
    %61 = vmatprep.subr.bf16.mxu0 0
    %62 = vmatpush1.bf16.msra.mxu0 %v59
    %63 = vmatprep.subr.bf16.mxu0 0
    %64 = vmatpush1.bf16.msra.mxu0 0
    %65 = vmatprep.subr.bf16.mxu0 0
    %66 = vmatpush1.bf16.msra.mxu0 0
    %67 = vmatprep.subr.bf16.mxu0 0
    %68 = vmatpush1.bf16.msra.mxu0 0
    %69 = vmatprep.subr.bf16.mxu0 0
    %70 = vmatpush1.bf16.msra.mxu0 0
    %71 = vmatprep.subr.bf16.mxu0 0
    %72 = vmatpush1.bf16.msra.mxu0 0
    %73 = vmatprep.subr.bf16.mxu0 0
    %74 = vmatpush1.bf16.msra.mxu0 0
    %75 = vmatprep.subr.bf16.mxu0 0
    %76 = vmatpush1.bf16.msra.mxu0 0
    %77 = vmatprep.subr.bf16.mxu0 0
    %78 = vmatpush1.bf16.msra.mxu0 0
    %79 = vmatprep.subr.bf16.mxu0 0
    %80 = vmatpush1.bf16.msra.mxu0 0
    %81 = vmatprep.subr.bf16.mxu0 0
    %82 = vmatpush1.bf16.msra.mxu0 0
    %83 = vmatprep.subr.bf16.mxu0 0
    %84 = vmatpush1.bf16.msra.mxu0 0
    %85 = vmatprep.subr.bf16.mxu0 0
    %86 = vmatpush1.bf16.msra.mxu0 0
    %87 = vmatprep.subr.bf16.mxu0 0
    %88 = vmatpush1.bf16.msra.mxu0 0
    %89 = vmatprep.subr.bf16.mxu0 0
    %90 = vmatpush1.bf16.msra.mxu0 0
    %91 = vmatprep.subr.bf16.mxu0 0
    %92 = vmatpush1.bf16.msra.mxu0 0
    %93 = vmatprep.mubr.bf16.mxu0 0
    %94 = vmatmul.mubr.bf16.gmra.mrb[0].mxu0 %v55
    %v95 = vpop.f32.mrb[0].mxu0
    %v96 = vadd.f32 %v52, %v95
    %v97 = vpop.f32.mrb[0].mxu0
    %v98 = vpop.f32.mrb[0].mxu0
    %v99 = vpop.f32.mrb[0].mxu0
    %100 = vdwg.mxu0
    %v101 = vmax.f32 %v96, 0.0
    %v102 = vpack.c.bf16 %v101, %v101
    %v103 = vlaneseq
    %v104 = vshrl.u32 %v103, 7
    %v105 = vsub.s32 0, %v104
    %v106 = vrot.slane %v48, %v105
    %v123 = vunpack.c.l.b16 %v31
    %v124 = vunpack.c.l.b16 %v32
    %v125 = vunpack.c.l.b16 %v33
    %v126 = vunpack.c.l.b16 %v34
    %v127 = vunpack.c.l.b16 %v35
    %v128 = vunpack.c.l.b16 %v36
    %v129 = vunpack.c.l.b16 %v37
    %v130 = vunpack.c.l.b16 %v38
    %v131 = vunpack.c.l.b16 %v39
    %v132 = vunpack.c.l.b16 %v40
    %v133 = vunpack.c.l.b16 %v41
    %v134 = vunpack.c.l.b16 %v42
    %v135 = vunpack.c.l.b16 %v43
    %v136 = vunpack.c.l.b16 %v44
    %v137 = vunpack.c.l.b16 %v45
    %v138 = vunpack.c.l.b16 %v46
    %v139 = vpack.c.b16 %v124, %v123
    %v140 = vpack.c.b16 %v126, %v125
    %v141 = vpack.c.b16 %v128, %v127
    %v142 = vpack.c.b16 %v130, %v129
    %v143 = vpack.c.b16 %v132, %v131
    %v144 = vpack.c.b16 %v134, %v133
    %v145 = vpack.c.b16 %v136, %v135
    %v146 = vpack.c.b16 %v138, %v137
    %155 = vmatprep.subr.bf16.mxu0 0
    %156 = vmatpush1.bf16.msra.mxu0 %v139
    %157 = vmatprep.subr.bf16.mxu0 0
    %158 = vmatpush1.bf16.msra.mxu0 %v140
    %159 = vmatprep.subr.bf16.mxu0 0
    %160 = vmatpush1.bf16.msra.mxu0 %v141
    %161 = vmatprep.subr.bf16.mxu0 0
    %162 = vmatpush1.bf16.msra.mxu0 %v142
    %163 = vmatprep.subr.bf16.mxu0 0
    %164 = vmatpush1.bf16.msra.mxu0 %v143
    %165 = vmatprep.subr.bf16.mxu0 0
    %166 = vmatpush1.bf16.msra.mxu0 %v144
    %167 = vmatprep.subr.bf16.mxu0 0
    %168 = vmatpush1.bf16.msra.mxu0 %v145
    %169 = vmatprep.subr.bf16.mxu0 0
    %170 = vmatpush1.bf16.msra.mxu0 %v146
    %171 = vmatprep.subr.bf16.mxu0 0
    %172 = vmatpush1.bf16.msra.mxu0 0
    %173 = vmatprep.subr.bf16.mxu0 0
    %174 = vmatpush1.bf16.msra.mxu0 0
    %175 = vmatprep.subr.bf16.mxu0 0
    %176 = vmatpush1.bf16.msra.mxu0 0
    %177 = vmatprep.subr.bf16.mxu0 0
    %178 = vmatpush1.bf16.msra.mxu0 0
    %179 = vmatprep.subr.bf16.mxu0 0
    %180 = vmatpush1.bf16.msra.mxu0 0
    %181 = vmatprep.subr.bf16.mxu0 0
    %182 = vmatpush1.bf16.msra.mxu0 0
    %183 = vmatprep.subr.bf16.mxu0 0
    %184 = vmatpush1.bf16.msra.mxu0 0
    %185 = vmatprep.subr.bf16.mxu0 0
    %186 = vmatpush1.bf16.msra.mxu0 0
    %187 = vmatprep.mubr.bf16.mxu0 0
    %188 = vmatmul.mubr.bf16.gmra.mrb[0].mxu0 %v102
    %v189 = vpop.f32.mrb[0].mxu0
    %v190 = vadd.f32 %v106, %v189
    %v191 = vpop.f32.mrb[0].mxu0
    %v192 = vpop.f32.mrb[0].mxu0
    %v193 = vpop.f32.mrb[0].mxu0
    %194 = vdwg.mxu0
    %v195 = vpack.c.bf16 %v190, %v190
    %196 = vst [vmem:[%s3] sm:$0xf] %v195
    // Predicated region
    $region18: #{policy_forward.1} parent=1 // pred_check
      _
    $region19: #{policy_forward.1} parent=1 // pred_check_branch
      %198 = sbr.rel (0) target = $region21
    $region20: #{policy_forward.1} parent=1 // pred_region
      _
    $region21: #{policy_forward.1} parent=1 // pred_fallthru
      _
    // Predicated region
    $region22: #{policy_forward.1} parent=1 // pred_check
      _
    $region23: #{policy_forward.1} parent=1 // pred_check_branch
      %200 = sbr.rel (0) target = $region25
    $region24: #{policy_forward.1} parent=1 // pred_region
      _
    $region25: #{policy_forward.1} parent=1 // pred_fallthru
      _
    %201 = vsyncpa [#allocation3], 1

</llo_original>
